<compile_context>
chip_gen: v5e
topology: v5e:2x2
jax: 0.10.0
libtpu: 0.0.40
codegen_flags: <defaults>
</compile_context>

<pallas_src>
import jax
import jax.numpy as jnp
from jax.experimental import pallas as pl
from jax.experimental.pallas import tpu as pltpu


def critic_kernel(x_ref, w1_ref, bw_ref, b2_ref, o_ref):
    # Layer 1 on the MXU with f32 accumulation; bias + ReLU on the VPU in f32.
    h = jnp.dot(x_ref[...], w1_ref[...], preferred_element_type=jnp.float32)
    h = jnp.maximum(h + bw_ref[0:1, :], 0.0)                  # (TB, hidden)
    # Layer 2 (hidden -> 1): VPU multiply + XLU cross-lane reduce.  keepdims
    # keeps the result in (TB, 1) sublane layout -> no relayout before store.
    v = jnp.sum(h * bw_ref[1:2, :], axis=-1, keepdims=True)   # (TB, 1)
    o_ref[...] = (v + b2_ref[0]).astype(o_ref.dtype)          # scalar b2 from SMEM


def _round_up(x, m):
    return ((x + m - 1) // m) * m


_TB_CAP = 2048  # ~0.25 MiB x tile (n_states=32) — trivially inside VMEM on v5e/v6e/v7x


def _choose_tb(B):
    """Batch tile: large enough to amortize the ~0.35 us per-grid-step overhead,
    a multiple of 128 when tiled, and (best effort) an even grid length >= 2 for
    large B so v7x's two TensorCores get balanced work."""
    b8 = _round_up(max(B, 1), 8)
    b128 = _round_up(max(B, 1), 128)
    if b128 <= 2 * 128:
        return min(b128, b8)                      # tiny batch: single tile, no raggedness
    n_steps = max(2, -(-b128 // _TB_CAP))         # ceil
    if n_steps % 2:
        n_steps += 1                              # even step count -> megacore balance
    return min(_TB_CAP, _round_up(-(-B // n_steps), 128))


def prepare_critic_params(w1, b1, w2, b2, *, matmul_dtype=None):
    """One-time parameter prep (hoisted out of the forward path).

    Returns (w1p, bw, b2s):
      w1p : (n_states, hidden), optionally cast to matmul_dtype (bf16 fast path)
      bw  : (2, hidden) f32 — row 0 = b1, row 1 = w2^T (single VMEM operand)
      b2s : (1,) f32 — scalar output bias, placed in SMEM by the kernel call
    """
    n_states, hidden = w1.shape
    b1 = jnp.asarray(b1, jnp.float32).reshape(1, hidden)
    w2_row = jnp.asarray(w2, jnp.float32).reshape(hidden, 1).T        # (1, hidden)
    bw = jnp.concatenate([b1, w2_row], axis=0)                        # (2, hidden)
    b2s = jnp.asarray(b2, jnp.float32).reshape((1,))
    w1p = jnp.asarray(w1, jnp.float32 if matmul_dtype is None else matmul_dtype)
    return w1p, bw, b2s


def critic_forward(x, w1p, bw, b2s):
    """v = relu(x @ W1 + b1) @ W2 + b2 for pre-prepped params. Returns (B, 1) f32."""
    B, n_states = x.shape
    hidden = w1p.shape[1]
    assert w1p.shape == (n_states, hidden)
    assert bw.shape == (2, hidden)
    assert b2s.shape == (1,)

    # Opt-in bf16 fast path: decided once at prep time via w1p's dtype.
    if x.dtype != w1p.dtype:
        x = x.astype(w1p.dtype)

    TB = _choose_tb(B)
    grid = (pl.cdiv(B, TB),)   # no wrapper pad: ragged last block is masked by Pallas

    return pl.pallas_call(
        critic_kernel,
        out_shape=jax.ShapeDtypeStruct((B, 1), jnp.float32),
        grid=grid,
        in_specs=[
            # x tile changes per grid step (double-buffered by the pipeline).
            # TODO(synk): if a profile shows exposed x DMA, add pipeline_mode=pl.Buffered(3).
            pl.BlockSpec((TB, n_states), lambda i: (i, 0)),
            # Weights: constant index_map -> DMA'd once, VMEM-resident across steps.
            pl.BlockSpec((n_states, hidden), lambda i: (0, 0)),
            pl.BlockSpec((2, hidden), lambda i: (0, 0)),
            # Scalar output bias in SMEM (no padded VMEM tile / extra vector DMA).
            pl.BlockSpec(memory_space=pltpu.MemorySpace.SMEM),
        ],
        # Output written directly in PyTorch (B, 1) layout; ragged last block
        # writes past B are dropped.
        out_specs=pl.BlockSpec((TB, 1), lambda i: (i, 0)),
        compiler_params=pltpu.CompilerParams(
            dimension_semantics=("parallel",)),
    )(x, w1p, bw, b2s)


def init_params(key, n_states, hidden=128):
    """Deterministic init mimicking PyTorch nn.Linear default (U(-k, k), k=1/sqrt(fan_in))."""
    k1, k2, k3, k4 = jax.random.split(key, 4)
    bound1 = 1.0 / jnp.sqrt(n_states)
    bound2 = 1.0 / jnp.sqrt(hidden)
    w1 = jax.random.uniform(k1, (n_states, hidden), jnp.float32, -bound1, bound1)
    b1 = jax.random.uniform(k2, (1, hidden), jnp.float32, -bound1, bound1)
    w2 = jax.random.uniform(k3, (hidden, 1), jnp.float32, -bound2, bound2)
    b2 = jax.random.uniform(k4, (1, 1), jnp.float32, -bound2, bound2)
    return w1, b1, w2, b2


if __name__ == "__main__":
    n_states = 32   # self.n_states
    batch = 8

    key = jax.random.PRNGKey(0)
    kx, kp = jax.random.split(key)
    x = jax.random.normal(kx, (batch, n_states), jnp.float32)
    w1, b1, w2, b2 = init_params(kp, n_states)

    # One-time parameter prep (outside the forward/inner-loop path).
    w1p, bw, b2s = prepare_critic_params(w1, b1, w2, b2)

    v = critic_forward(x, w1p, bw, b2s)
    v = jax.block_until_ready(v)

    # Pure-JAX reference check (default f32 path).
    h_ref = jnp.maximum(x @ w1 + b1, 0.0)
    v_ref = h_ref @ w2 + b2
    assert v.shape == (batch, 1)
    assert jnp.allclose(v, v_ref, atol=1e-5, rtol=1e-5)

    print("KERNEL_OK")
</pallas_src>

<mosaic_0001>
module attributes {stable_mosaic.version = 11 : i64} {
  func.func @critic_kernel(%arg0: i32, %arg1: memref<8x32xf32, #tpu.memory_space<vmem>>, %arg2: memref<32x128xf32, #tpu.memory_space<vmem>>, %arg3: memref<2x128xf32, #tpu.memory_space<vmem>>, %arg4: memref<1xf32, #tpu.memory_space<smem>>, %arg5: memref<8x1xf32, #tpu.memory_space<vmem>>) attributes {dimension_semantics = [#tpu.dimension_semantics<parallel>], iteration_bounds = array<i64: 1>, scalar_prefetch = 0 : i64, scratch_operands = 0 : i64, tpu.core_type = #tpu.core_type<tc>, window_params = [{transform_indices = @transform_0, window_bounds = array<i64: 8, 32>}, {pipeline_mode = #tpu.pipeline_mode<synchronous>, transform_indices = @transform_1, window_bounds = array<i64: 32, 128>}, {pipeline_mode = #tpu.pipeline_mode<synchronous>, transform_indices = @transform_2, window_bounds = array<i64: 2, 128>}, {transform_indices = @transform_3, window_bounds = array<i64: 1>}, {transform_indices = @transform_4, window_bounds = array<i64: 8, 1>}]} {
    %c0 = arith.constant 0 : index
    %c0_0 = arith.constant 0 : index
    %0 = vector.load %arg1[%c0, %c0_0] : memref<8x32xf32, #tpu.memory_space<vmem>>, vector<8x32xf32>
    %c0_1 = arith.constant 0 : index
    %c0_2 = arith.constant 0 : index
    %1 = vector.load %arg2[%c0_1, %c0_2] : memref<32x128xf32, #tpu.memory_space<vmem>>, vector<32x128xf32>
    %cst = arith.constant dense<0.000000e+00> : vector<8x128xf32>
    %2 = tpu.matmul %0, %1, %cst {dimension_numbers = #tpu.dot_dimension_numbers<[1], [0], [0], [1], [0, 0, 1, 1], [], []>} : vector<8x32xf32>, vector<32x128xf32>, vector<8x128xf32> -> vector<8x128xf32>
    %c0_3 = arith.constant 0 : index
    %c0_4 = arith.constant 0 : index
    %3 = vector.load %arg3[%c0_3, %c0_4] : memref<2x128xf32, #tpu.memory_space<vmem>>, vector<1x128xf32>
    %4 = vector.broadcast %3 : vector<1x128xf32> to vector<8x128xf32>
    %5 = arith.addf %2, %4 : vector<8x128xf32>
    %cst_5 = arith.constant 0.000000e+00 : f32
    %6 = vector.broadcast %cst_5 : f32 to vector<8x128xf32>
    %7 = arith.maximumf %5, %6 : vector<8x128xf32>
    %c1 = arith.constant 1 : index
    %c0_6 = arith.constant 0 : index
    %8 = vector.load %arg3[%c1, %c0_6] : memref<2x128xf32, #tpu.memory_space<vmem>>, vector<1x128xf32>
    %9 = vector.broadcast %8 : vector<1x128xf32> to vector<8x128xf32>
    %10 = arith.mulf %7, %9 : vector<8x128xf32>
    %cst_7 = arith.constant dense<0.000000e+00> : vector<8xf32>
    %11 = vector.multi_reduction <add>, %10, %cst_7 [1] : vector<8x128xf32> to vector<8xf32>
    %12 = vector.shape_cast %11 : vector<8xf32> to vector<8x1xf32>
    %c0_8 = arith.constant 0 : index
    %13 = memref.load %arg4[%c0_8] : memref<1xf32, #tpu.memory_space<smem>>
    %14 = vector.broadcast %13 : f32 to vector<8x1xf32>
    %15 = arith.addf %12, %14 : vector<8x1xf32>
    %c0_9 = arith.constant 0 : index
    %c0_10 = arith.constant 0 : index
    %16 = vector.load %arg5[%c0_9, %c0_10] : memref<8x1xf32, #tpu.memory_space<vmem>>, vector<8x1xf32>
    tpu.vector_store %arg5[%c0_9, %c0_10], %15 {strides = array<i32>} : memref<8x1xf32, #tpu.memory_space<vmem>>, vector<8x1xf32>,
    return
  }
  func.func @transform_0(%arg0: i32) -> (i32, i32) {
    %c0_i32 = arith.constant 0 : i32
    %c0_i32_0 = arith.constant 0 : i32
    return %arg0, %c0_i32 : i32, i32
  }
  func.func @transform_1(%arg0: i32) -> (i32, i32) {
    %c0_i32 = arith.constant 0 : i32
    %c0_i32_0 = arith.constant 0 : i32
    %c0_i32_1 = arith.constant 0 : i32
    return %c0_i32, %c0_i32_0 : i32, i32
  }
  func.func @transform_2(%arg0: i32) -> (i32, i32) {
    %c0_i32 = arith.constant 0 : i32
    %c0_i32_0 = arith.constant 0 : i32
    %c0_i32_1 = arith.constant 0 : i32
    return %c0_i32, %c0_i32_0 : i32, i32
  }
  func.func @transform_3(%arg0: i32) -> i32 {
    %c0_i32 = arith.constant 0 : i32
    %c0_i32_0 = arith.constant 0 : i32
    return %c0_i32 : i32
  }
  func.func @transform_4(%arg0: i32) -> (i32, i32) {
    %c0_i32 = arith.constant 0 : i32
    %c0_i32_0 = arith.constant 0 : i32
    return %arg0, %c0_i32 : i32, i32
  }
}

</mosaic_0001>

<llo_original>
// kernel: tpu_custom_call.1
$region0: #{tpu_custom_call.1}
  #allocation0 [shape = 'u32[]', space=smem, size = 0x4, offset = 0x4, fixed_abs, tag = 'smem constant byte address 0x4 - core index']
  #allocation1 [shape = 'u32[72,128]{1,0:T(1,128)}', space=vmem, size = 0x9000, scoped, tag = 'internal scratch']
  #allocation2 [shape = 'f32[1]{0:T(128)S(6)}', space=smem, size = 0x200, scoped, tag = 'scoped memory for tpu_custom_call.1']
  %s0 = inlined_call_operand.hbm [shape: f32[8,32], index: 0, kind: input, shape index: {}]
  %s1 = inlined_call_operand.hbm [shape: f32[32,128], index: 1, kind: input, shape index: {}]
  %s2 = inlined_call_operand.vmem [shape: f32[2,128], index: 2, kind: input, shape index: {}]
  %s3 = inlined_call_operand.<no memory space> [shape: f32[1], index: 3, kind: input, shape index: {}]
  %s4 = inlined_call_operand.vmem [shape: f32[8,1], index: 4, kind: output, shape index: {}]
  %s5 = sld [smem:[#allocation0]]
  $region34: #{tpu_custom_call.1} parent=0
    _
  %s7 = ssub.s32 1, %s5
  %s8 = scalar_select 0, %s7, %s5
  %9 = sst [smem:[#allocation2]] %s3
  $region1: #{tpu_custom_call.1} parent=0
    #allocation3 [shape = 'u8[4096]{0}', space=vmem, size = 0x1000, scoped, tag = 'input window, operand 0, single buffered']
    #allocation4 [shape = 's32[1]{0}', space=sflag, size = 0x4, scoped, tag = 'scoped memory for tpu_custom_call.1']
    #allocation5 [shape = 'u8[16384]{0}', space=vmem, size = 0x4000, scoped, tag = 'input window, operand 1, single buffered']
    #allocation6 [shape = 's32[1]{0}', space=sflag, size = 0x4, scoped, tag = 'scoped memory for tpu_custom_call.1']
    %10 = vsyncpa [#allocation4], 0
    %11 = vsyncpa [#allocation6], 0
    // Predicated region
    $region2: #{tpu_custom_call.1} parent=1 // pred_check
      _
    $region3: #{tpu_custom_call.1} parent=1 // pred_check_branch
      %13 = sbr.rel (0) target = $region5
    $region4: #{tpu_custom_call.1} parent=1 // pred_region
      %15 = vsyncadd [#allocation4], 0
      %s17 = sshll.u32 %s0, 4
      %s18 = int_to_ptr.hbm [resolvable:$true] %s17
      %s19 = sshll.u32 [#allocation3], 4
      %s20 = int_to_ptr.vmem [resolvable:$true] %s19
      %22 = dma.hbm_to_vmem [thread:$0]  %s18, 128, %s20, [#allocation4]
    $region5: #{tpu_custom_call.1} parent=1 // pred_fallthru
      _
    // Predicated region
    $region6: #{tpu_custom_call.1} parent=1 // pred_check
      _
    $region7: #{tpu_custom_call.1} parent=1 // pred_check_branch
      %24 = sbr.rel (0) target = $region9
    $region8: #{tpu_custom_call.1} parent=1 // pred_region
      %26 = vsyncadd [#allocation6], 0
      %s27 = sshll.u32 %s1, 4
      %s28 = int_to_ptr.hbm [resolvable:$true] %s27
      %s29 = sshll.u32 [#allocation5], 4
      %s30 = int_to_ptr.vmem [resolvable:$true] %s29
      %35 = dma.hbm_to_vmem [thread:$0]  %s28, 512, %s30, [#allocation6], 128, 128, 8
    $region9: #{tpu_custom_call.1} parent=1 // pred_fallthru
      _
    // Predicated region
    $region10: #{tpu_custom_call.1} parent=1 // pred_check
      _
    $region11: #{tpu_custom_call.1} parent=1 // pred_check_branch
      %37 = sbr.rel (0) target = $region13
    $region12: #{tpu_custom_call.1} parent=1 // pred_region
      _
    $region13: #{tpu_custom_call.1} parent=1 // pred_fallthru
      _
    // Predicated region
    $region14: #{tpu_custom_call.1} parent=1 // pred_check
      _
    $region15: #{tpu_custom_call.1} parent=1 // pred_check_branch
      %39 = sbr.rel (0) target = $region17
    $region16: #{tpu_custom_call.1} parent=1 // pred_region
      _
    $region17: #{tpu_custom_call.1} parent=1 // pred_fallthru
      _
    // Predicated region
    $region18: #{tpu_custom_call.1} parent=1 // pred_check
      _
    $region19: #{tpu_custom_call.1} parent=1 // pred_check_branch
      %41 = sbr.rel (0) target = $region21
    $region20: #{tpu_custom_call.1} parent=1 // pred_region
      %43 = dma.done [#allocation4], 128
    $region21: #{tpu_custom_call.1} parent=1 // pred_fallthru
      _
    // Predicated region
    $region22: #{tpu_custom_call.1} parent=1 // pred_check
      _
    $region23: #{tpu_custom_call.1} parent=1 // pred_check_branch
      %45 = sbr.rel (0) target = $region25
    $region24: #{tpu_custom_call.1} parent=1 // pred_region
      %47 = dma.done [#allocation6], 512
    $region25: #{tpu_custom_call.1} parent=1 // pred_fallthru
      _
    %v48 = vld [vmem:[#allocation3] sm:$0xff]
    %v49 = vld [vmem:[#allocation5] sm:$0xff]
    %v50 = vld [vmem:[#allocation5 + $0x8] sm:$0xff]
    %v51 = vld [vmem:[#allocation5 + $0x10] sm:$0xff]
    %v52 = vld [vmem:[#allocation5 + $0x18] sm:$0xff]
    %v53 = vld [vmem:[%s2] sm:$0x1]
    %v54 = vperm.slane %v53, 0
    %vm55 = vcmask 261120
    %v57 = vsel %vm55, %v48, 0
    %59 = vmatpush.msra.mxu0 0.0
    %60 = vmatpush.msra.mxu0 0.0
    %61 = vmatpush.msra.mxu0 0.0
    %62 = vmatpush.msra.mxu0 0.0
    %63 = vmatpush.msra.mxu0 0.0
    %64 = vmatpush.msra.mxu0 0.0
    %65 = vmatpush.msra.mxu0 0.0
    %66 = vmatpush.msra.mxu0 0.0
    %67 = vmatpush.msra.mxu0 0.0
    %68 = vmatpush.msra.mxu0 0.0
    %69 = vmatpush.msra.mxu0 0.0
    %70 = vmatpush.msra.mxu0 0.0
    %71 = vmatpush.msra.mxu0 %v52
    %72 = vmatpush.msra.mxu0 %v51
    %73 = vmatpush.msra.mxu0 %v50
    %74 = vmatpush.msra.mxu0 %v49
    %75 = vmatmul.f32.gmra.mxu0 %v57
    %v76 = vpop.f32.mrf.mxu0
    %v77 = vadd.f32 %v54, %v76
    %78 = vdwg.mxu0
    %v79 = vmax.f32 %v77, 0.0
    %v80 = vld [vmem:[%s2 + $0x1] sm:$0x1]
    %v81 = vperm.slane %v80, 0
    %v82 = vmul.f32 %v79, %v81
    %83 = vadd.xlane.f32.xlu0 %v82
    %v84 = vpop.xlane.xlu0 %83
    %s85 = sld [smem:[#allocation2]]
    %v86 = vstv %s85
    %v87 = vadd.f32 %v84, %v86
    %vm88 = vcmask 7168
    %89 = vst.msk [vmem:[%s4] sm:$0xff] %vm88, %v87
    // Predicated region
    $region26: #{tpu_custom_call.1} parent=1 // pred_check
      _
    $region27: #{tpu_custom_call.1} parent=1 // pred_check_branch
      %91 = sbr.rel (0) target = $region29
    $region28: #{tpu_custom_call.1} parent=1 // pred_region
      _
    $region29: #{tpu_custom_call.1} parent=1 // pred_fallthru
      _
    // Predicated region
    $region30: #{tpu_custom_call.1} parent=1 // pred_check
      _
    $region31: #{tpu_custom_call.1} parent=1 // pred_check_branch
      %93 = sbr.rel (0) target = $region33
    $region32: #{tpu_custom_call.1} parent=1 // pred_region
      _
    $region33: #{tpu_custom_call.1} parent=1 // pred_fallthru
      _
    %94 = vsyncpa [#allocation4], 1
    %95 = vsyncpa [#allocation6], 1

</llo_original>
